<compile_context>
chip_gen: v5e
topology: v5e:2x2
jax: 0.10.0
libtpu: 0.0.40
codegen_flags: <defaults>
</compile_context>

<pallas_src>
import math
import functools

import jax
import jax.numpy as jnp
from jax.experimental import pallas as pl
from jax.experimental.pallas import tpu as pltpu


def _embed_gather_kernel(tok_ref, emb_hbm, out_ref, gather_buf, sems, *,
                         tile_n, n_inflight, scale):
    # tok_ref:    (n_padded,) int32 in SMEM (scalar prefetch)
    # emb_hbm:    (vocab, d_model) ref left in HBM (no auto-DMA)
    # out_ref:    (tile_n, d_model) VMEM output block
    # gather_buf: (tile_n, d_model) VMEM scratch (gather destination)
    # sems:       (n_inflight,) DMA completion semaphores
    base = pl.program_id(0) * tile_n

    def start_row(r, slot):
        tok = tok_ref[base + r]
        pltpu.make_async_copy(
            emb_hbm.at[pl.ds(tok, 1), :],
            gather_buf.at[pl.ds(r, 1), :],
            sems.at[slot]).start()

    def wait_row(r, slot):
        # Shape-matched descriptor is all the wait needs (same byte count).
        pltpu.make_async_copy(
            emb_hbm.at[pl.ds(0, 1), :],
            gather_buf.at[pl.ds(r, 1), :],
            sems.at[slot]).wait()

    # Prime: put n_inflight row-gather DMAs in flight.
    for r in range(n_inflight):
        start_row(r, r)

    # Steady state: wait for row r, then immediately refill its semaphore slot
    # with row r + n_inflight (a full window stays in flight throughout).
    @pl.loop(0, tile_n)
    def _(r):
        slot = r & (n_inflight - 1)
        wait_row(r, slot)

        @pl.when(r + n_inflight < tile_n)
        def _():
            start_row(r + n_inflight, slot)

    # Scale by sqrt(d_model) and emit one lane-dense output slab.
    out_ref[...] = (gather_buf[...] * scale).astype(out_ref.dtype)


def input_embedding(tokens, emb_table, *, tile_n=256, n_inflight=8):
    """tokens: int [B, S]; emb_table: [vocab, d_model] -> [B, S, d_model]."""
    B, S = tokens.shape
    vocab_size, d_model = emb_table.shape
    N = B * S

    # Row tile: multiple of 8 (sublane alignment), no larger than the padded
    # token count (avoids gathering hundreds of pad rows for tiny inputs).
    tile_n = max(8, (int(tile_n) // 8) * 8)
    n_padded_min = ((N + 7) // 8) * 8
    tile_n = min(tile_n, n_padded_min)

    n_tiles = pl.cdiv(N, tile_n)
    n_padded = n_tiles * tile_n

    # Clamp ids (out-of-range ids are undefined for nn.Embedding; clamping
    # avoids an OOB HBM DMA), flatten, and pad to a whole number of tiles.
    tok_flat = jnp.clip(tokens.reshape(N).astype(jnp.int32), 0, vocab_size - 1)
    tok_flat = jnp.pad(tok_flat, (0, n_padded - N))

    # Power-of-two in-flight window, no larger than the tile.
    n_inflight = max(1, min(int(n_inflight), tile_n))
    n_inflight = 1 << (n_inflight.bit_length() - 1)

    scale = math.sqrt(d_model)
    itemsize = jnp.dtype(emb_table.dtype).itemsize
    tile_bytes = tile_n * d_model * itemsize
    # Explicit VMEM budget: double-buffered output block + gather scratch +
    # headroom; capped well under v7x's 64 MiB per TensorCore.
    vmem_budget = int(min(max(6 * tile_bytes, 4 << 20), 48 << 20))

    kernel = functools.partial(_embed_gather_kernel, tile_n=tile_n,
                               n_inflight=n_inflight, scale=scale)

    out_flat = pl.pallas_call(
        kernel,
        out_shape=jax.ShapeDtypeStruct((n_padded, d_model), emb_table.dtype),
        grid_spec=pltpu.PrefetchScalarGridSpec(
            num_scalar_prefetch=1,                         # token ids -> SMEM
            grid=(n_tiles,),
            in_specs=[pl.BlockSpec(memory_space=pl.ANY)],  # table stays in HBM
            out_specs=pl.BlockSpec((tile_n, d_model), lambda i, tok: (i, 0)),
            scratch_shapes=[
                pltpu.VMEM((tile_n, d_model), emb_table.dtype),
                pltpu.SemaphoreType.DMA((n_inflight,)),
            ]),
        compiler_params=pltpu.CompilerParams(
            dimension_semantics=("parallel",),
            vmem_limit_bytes=vmem_budget),
        cost_estimate=pl.CostEstimate(
            flops=N * d_model,                       # the sqrt(d_model) scale
            transcendentals=0,
            bytes_accessed=2 * N * d_model * itemsize + N * 4),
    )(tok_flat, emb_table)

    return out_flat[:N].reshape(B, S, d_model)


if __name__ == "__main__":
    # Small, deterministic config consistent with the module's forward.
    vocab_size = 32
    d_model = 128
    B, S = 2, 8

    key = jax.random.PRNGKey(0)
    k_tok, k_emb = jax.random.split(key)

    tokens = jax.random.randint(k_tok, (B, S), 0, vocab_size, dtype=jnp.int32)
    # nn.Embedding weight init ~ N(0, 1); deterministic synthetic init here.
    emb_table = jax.random.normal(k_emb, (vocab_size, d_model), dtype=jnp.float32)

    out = input_embedding(tokens, emb_table)
    out = jax.block_until_ready(out)

    # Reference check (plain JAX gather * sqrt(d_model)).
    ref = jnp.take(emb_table, tokens, axis=0) * math.sqrt(d_model)
    assert out.shape == (B, S, d_model)
    assert jnp.allclose(out, ref, atol=1e-5, rtol=1e-5), "mismatch vs reference"

    print("KERNEL_OK")
</pallas_src>

<mosaic_0001>
module attributes {stable_mosaic.version = 11 : i64} {
  func.func @_embed_gather_kernel(%arg0: i32, %arg1: memref<16xi32, #tpu.memory_space<smem>>, %arg2: memref<32x128xf32, #tpu.memory_space<any>>, %arg3: memref<16x128xf32, #tpu.memory_space<vmem>>, %arg4: memref<16x128xf32, #tpu.memory_space<vmem>>, %arg5: memref<8x!tpu.dma_semaphore, #tpu.memory_space<semaphore_mem>>) attributes {dimension_semantics = [#tpu.dimension_semantics<parallel>], iteration_bounds = array<i64: 1>, scalar_prefetch = 1 : i64, scratch_operands = 2 : i64, tpu.core_type = #tpu.core_type<tc>, window_params = [{}, {transform_indices = @transform_1, window_bounds = array<i64: 16, 128>}]} {
    %c16_i32 = arith.constant 16 : i32
    %0 = arith.muli %arg0, %c16_i32 : i32
    %c0_i32 = arith.constant 0 : i32
    %1 = arith.addi %0, %c0_i32 : i32
    %2 = arith.index_cast %1 : i32 to index
    %3 = memref.load %arg1[%2] : memref<16xi32, #tpu.memory_space<smem>>
    %c0_i32_0 = arith.constant 0 : i32
    %c0_i32_1 = arith.constant 0 : i32
    %4 = tpu.memref_slice %arg2[%3, %c0_i32_1] : memref<32x128xf32, #tpu.memory_space<any>> -> memref<1x128xf32, #tpu.memory_space<any>>
    %c0_i32_2 = arith.constant 0 : i32
    %c0_i32_3 = arith.constant 0 : i32
    %5 = tpu.memref_slice %arg4[%c0_i32_2, %c0_i32_3] : memref<16x128xf32, #tpu.memory_space<vmem>> -> memref<1x128xf32, #tpu.memory_space<vmem>>
    %6 = tpu.memref_slice %arg5[%c0_i32_0] : memref<8x!tpu.dma_semaphore, #tpu.memory_space<semaphore_mem>> -> memref<1x!tpu.dma_semaphore, #tpu.memory_space<semaphore_mem>>
    %7 = tpu.memref_squeeze %6 : memref<1x!tpu.dma_semaphore, #tpu.memory_space<semaphore_mem>> -> memref<!tpu.dma_semaphore, #tpu.memory_space<semaphore_mem>>
    tpu.enqueue_dma source(%4 : memref<1x128xf32, #tpu.memory_space<any>>) target(%5 : memref<1x128xf32, #tpu.memory_space<vmem>>) target_semaphore(%7 : memref<!tpu.dma_semaphore, #tpu.memory_space<semaphore_mem>>)
    %c1_i32 = arith.constant 1 : i32
    %8 = arith.addi %0, %c1_i32 : i32
    %9 = arith.index_cast %8 : i32 to index
    %10 = memref.load %arg1[%9] : memref<16xi32, #tpu.memory_space<smem>>
    %c1_i32_4 = arith.constant 1 : i32
    %c0_i32_5 = arith.constant 0 : i32
    %11 = tpu.memref_slice %arg2[%10, %c0_i32_5] : memref<32x128xf32, #tpu.memory_space<any>> -> memref<1x128xf32, #tpu.memory_space<any>>
    %c1_i32_6 = arith.constant 1 : i32
    %c0_i32_7 = arith.constant 0 : i32
    %12 = tpu.memref_slice %arg4[%c1_i32_6, %c0_i32_7] : memref<16x128xf32, #tpu.memory_space<vmem>> -> memref<1x128xf32, #tpu.memory_space<vmem>>
    %13 = tpu.memref_slice %arg5[%c1_i32_4] : memref<8x!tpu.dma_semaphore, #tpu.memory_space<semaphore_mem>> -> memref<1x!tpu.dma_semaphore, #tpu.memory_space<semaphore_mem>>
    %14 = tpu.memref_squeeze %13 : memref<1x!tpu.dma_semaphore, #tpu.memory_space<semaphore_mem>> -> memref<!tpu.dma_semaphore, #tpu.memory_space<semaphore_mem>>
    tpu.enqueue_dma source(%11 : memref<1x128xf32, #tpu.memory_space<any>>) target(%12 : memref<1x128xf32, #tpu.memory_space<vmem>>) target_semaphore(%14 : memref<!tpu.dma_semaphore, #tpu.memory_space<semaphore_mem>>)
    %c2_i32 = arith.constant 2 : i32
    %15 = arith.addi %0, %c2_i32 : i32
    %16 = arith.index_cast %15 : i32 to index
    %17 = memref.load %arg1[%16] : memref<16xi32, #tpu.memory_space<smem>>
    %c2_i32_8 = arith.constant 2 : i32
    %c0_i32_9 = arith.constant 0 : i32
    %18 = tpu.memref_slice %arg2[%17, %c0_i32_9] : memref<32x128xf32, #tpu.memory_space<any>> -> memref<1x128xf32, #tpu.memory_space<any>>
    %c2_i32_10 = arith.constant 2 : i32
    %c0_i32_11 = arith.constant 0 : i32
    %19 = tpu.memref_slice %arg4[%c2_i32_10, %c0_i32_11] : memref<16x128xf32, #tpu.memory_space<vmem>> -> memref<1x128xf32, #tpu.memory_space<vmem>>
    %20 = tpu.memref_slice %arg5[%c2_i32_8] : memref<8x!tpu.dma_semaphore, #tpu.memory_space<semaphore_mem>> -> memref<1x!tpu.dma_semaphore, #tpu.memory_space<semaphore_mem>>
    %21 = tpu.memref_squeeze %20 : memref<1x!tpu.dma_semaphore, #tpu.memory_space<semaphore_mem>> -> memref<!tpu.dma_semaphore, #tpu.memory_space<semaphore_mem>>
    tpu.enqueue_dma source(%18 : memref<1x128xf32, #tpu.memory_space<any>>) target(%19 : memref<1x128xf32, #tpu.memory_space<vmem>>) target_semaphore(%21 : memref<!tpu.dma_semaphore, #tpu.memory_space<semaphore_mem>>)
    %c3_i32 = arith.constant 3 : i32
    %22 = arith.addi %0, %c3_i32 : i32
    %23 = arith.index_cast %22 : i32 to index
    %24 = memref.load %arg1[%23] : memref<16xi32, #tpu.memory_space<smem>>
    %c3_i32_12 = arith.constant 3 : i32
    %c0_i32_13 = arith.constant 0 : i32
    %25 = tpu.memref_slice %arg2[%24, %c0_i32_13] : memref<32x128xf32, #tpu.memory_space<any>> -> memref<1x128xf32, #tpu.memory_space<any>>
    %c3_i32_14 = arith.constant 3 : i32
    %c0_i32_15 = arith.constant 0 : i32
    %26 = tpu.memref_slice %arg4[%c3_i32_14, %c0_i32_15] : memref<16x128xf32, #tpu.memory_space<vmem>> -> memref<1x128xf32, #tpu.memory_space<vmem>>
    %27 = tpu.memref_slice %arg5[%c3_i32_12] : memref<8x!tpu.dma_semaphore, #tpu.memory_space<semaphore_mem>> -> memref<1x!tpu.dma_semaphore, #tpu.memory_space<semaphore_mem>>
    %28 = tpu.memref_squeeze %27 : memref<1x!tpu.dma_semaphore, #tpu.memory_space<semaphore_mem>> -> memref<!tpu.dma_semaphore, #tpu.memory_space<semaphore_mem>>
    tpu.enqueue_dma source(%25 : memref<1x128xf32, #tpu.memory_space<any>>) target(%26 : memref<1x128xf32, #tpu.memory_space<vmem>>) target_semaphore(%28 : memref<!tpu.dma_semaphore, #tpu.memory_space<semaphore_mem>>)
    %c4_i32 = arith.constant 4 : i32
    %29 = arith.addi %0, %c4_i32 : i32
    %30 = arith.index_cast %29 : i32 to index
    %31 = memref.load %arg1[%30] : memref<16xi32, #tpu.memory_space<smem>>
    %c4_i32_16 = arith.constant 4 : i32
    %c0_i32_17 = arith.constant 0 : i32
    %32 = tpu.memref_slice %arg2[%31, %c0_i32_17] : memref<32x128xf32, #tpu.memory_space<any>> -> memref<1x128xf32, #tpu.memory_space<any>>
    %c4_i32_18 = arith.constant 4 : i32
    %c0_i32_19 = arith.constant 0 : i32
    %33 = tpu.memref_slice %arg4[%c4_i32_18, %c0_i32_19] : memref<16x128xf32, #tpu.memory_space<vmem>> -> memref<1x128xf32, #tpu.memory_space<vmem>>
    %34 = tpu.memref_slice %arg5[%c4_i32_16] : memref<8x!tpu.dma_semaphore, #tpu.memory_space<semaphore_mem>> -> memref<1x!tpu.dma_semaphore, #tpu.memory_space<semaphore_mem>>
    %35 = tpu.memref_squeeze %34 : memref<1x!tpu.dma_semaphore, #tpu.memory_space<semaphore_mem>> -> memref<!tpu.dma_semaphore, #tpu.memory_space<semaphore_mem>>
    tpu.enqueue_dma source(%32 : memref<1x128xf32, #tpu.memory_space<any>>) target(%33 : memref<1x128xf32, #tpu.memory_space<vmem>>) target_semaphore(%35 : memref<!tpu.dma_semaphore, #tpu.memory_space<semaphore_mem>>)
    %c5_i32 = arith.constant 5 : i32
    %36 = arith.addi %0, %c5_i32 : i32
    %37 = arith.index_cast %36 : i32 to index
    %38 = memref.load %arg1[%37] : memref<16xi32, #tpu.memory_space<smem>>
    %c5_i32_20 = arith.constant 5 : i32
    %c0_i32_21 = arith.constant 0 : i32
    %39 = tpu.memref_slice %arg2[%38, %c0_i32_21] : memref<32x128xf32, #tpu.memory_space<any>> -> memref<1x128xf32, #tpu.memory_space<any>>
    %c5_i32_22 = arith.constant 5 : i32
    %c0_i32_23 = arith.constant 0 : i32
    %40 = tpu.memref_slice %arg4[%c5_i32_22, %c0_i32_23] : memref<16x128xf32, #tpu.memory_space<vmem>> -> memref<1x128xf32, #tpu.memory_space<vmem>>
    %41 = tpu.memref_slice %arg5[%c5_i32_20] : memref<8x!tpu.dma_semaphore, #tpu.memory_space<semaphore_mem>> -> memref<1x!tpu.dma_semaphore, #tpu.memory_space<semaphore_mem>>
    %42 = tpu.memref_squeeze %41 : memref<1x!tpu.dma_semaphore, #tpu.memory_space<semaphore_mem>> -> memref<!tpu.dma_semaphore, #tpu.memory_space<semaphore_mem>>
    tpu.enqueue_dma source(%39 : memref<1x128xf32, #tpu.memory_space<any>>) target(%40 : memref<1x128xf32, #tpu.memory_space<vmem>>) target_semaphore(%42 : memref<!tpu.dma_semaphore, #tpu.memory_space<semaphore_mem>>)
    %c6_i32 = arith.constant 6 : i32
    %43 = arith.addi %0, %c6_i32 : i32
    %44 = arith.index_cast %43 : i32 to index
    %45 = memref.load %arg1[%44] : memref<16xi32, #tpu.memory_space<smem>>
    %c6_i32_24 = arith.constant 6 : i32
    %c0_i32_25 = arith.constant 0 : i32
    %46 = tpu.memref_slice %arg2[%45, %c0_i32_25] : memref<32x128xf32, #tpu.memory_space<any>> -> memref<1x128xf32, #tpu.memory_space<any>>
    %c6_i32_26 = arith.constant 6 : i32
    %c0_i32_27 = arith.constant 0 : i32
    %47 = tpu.memref_slice %arg4[%c6_i32_26, %c0_i32_27] : memref<16x128xf32, #tpu.memory_space<vmem>> -> memref<1x128xf32, #tpu.memory_space<vmem>>
    %48 = tpu.memref_slice %arg5[%c6_i32_24] : memref<8x!tpu.dma_semaphore, #tpu.memory_space<semaphore_mem>> -> memref<1x!tpu.dma_semaphore, #tpu.memory_space<semaphore_mem>>
    %49 = tpu.memref_squeeze %48 : memref<1x!tpu.dma_semaphore, #tpu.memory_space<semaphore_mem>> -> memref<!tpu.dma_semaphore, #tpu.memory_space<semaphore_mem>>
    tpu.enqueue_dma source(%46 : memref<1x128xf32, #tpu.memory_space<any>>) target(%47 : memref<1x128xf32, #tpu.memory_space<vmem>>) target_semaphore(%49 : memref<!tpu.dma_semaphore, #tpu.memory_space<semaphore_mem>>)
    %c7_i32 = arith.constant 7 : i32
    %50 = arith.addi %0, %c7_i32 : i32
    %51 = arith.index_cast %50 : i32 to index
    %52 = memref.load %arg1[%51] : memref<16xi32, #tpu.memory_space<smem>>
    %c7_i32_28 = arith.constant 7 : i32
    %c0_i32_29 = arith.constant 0 : i32
    %53 = tpu.memref_slice %arg2[%52, %c0_i32_29] : memref<32x128xf32, #tpu.memory_space<any>> -> memref<1x128xf32, #tpu.memory_space<any>>
    %c7_i32_30 = arith.constant 7 : i32
    %c0_i32_31 = arith.constant 0 : i32
    %54 = tpu.memref_slice %arg4[%c7_i32_30, %c0_i32_31] : memref<16x128xf32, #tpu.memory_space<vmem>> -> memref<1x128xf32, #tpu.memory_space<vmem>>
    %55 = tpu.memref_slice %arg5[%c7_i32_28] : memref<8x!tpu.dma_semaphore, #tpu.memory_space<semaphore_mem>> -> memref<1x!tpu.dma_semaphore, #tpu.memory_space<semaphore_mem>>
    %56 = tpu.memref_squeeze %55 : memref<1x!tpu.dma_semaphore, #tpu.memory_space<semaphore_mem>> -> memref<!tpu.dma_semaphore, #tpu.memory_space<semaphore_mem>>
    tpu.enqueue_dma source(%53 : memref<1x128xf32, #tpu.memory_space<any>>) target(%54 : memref<1x128xf32, #tpu.memory_space<vmem>>) target_semaphore(%56 : memref<!tpu.dma_semaphore, #tpu.memory_space<semaphore_mem>>)
    %c0_i32_32 = arith.constant 0 : i32
    %c16_i32_33 = arith.constant 16 : i32
    %57 = arith.addi %c0_i32_32, %c16_i32_33 : i32
    %c1_i32_34 = arith.constant 1 : i32
    scf.for %arg6 = %c0_i32_32 to %57 step %c1_i32_34  : i32 {
      %c1_i32_39 = arith.constant 1 : i32
      %62 = arith.muli %arg6, %c1_i32_39 : i32
      %c0_i32_40 = arith.constant 0 : i32
      %63 = arith.addi %c0_i32_40, %62 : i32
      %c7_i32_41 = arith.constant 7 : i32
      %64 = arith.andi %63, %c7_i32_41 : i32
      %c0_i32_42 = arith.constant 0 : i32
      %c0_i32_43 = arith.constant 0 : i32
      %65 = tpu.memref_slice %arg2[%c0_i32_42, %c0_i32_43] : memref<32x128xf32, #tpu.memory_space<any>> -> memref<1x128xf32, #tpu.memory_space<any>>
      %c0_i32_44 = arith.constant 0 : i32
      %66 = tpu.memref_slice %arg4[%63, %c0_i32_44] : memref<16x128xf32, #tpu.memory_space<vmem>> -> memref<1x128xf32, #tpu.memory_space<vmem>>
      %67 = tpu.memref_slice %arg5[%64] : memref<8x!tpu.dma_semaphore, #tpu.memory_space<semaphore_mem>> -> memref<1x!tpu.dma_semaphore, #tpu.memory_space<semaphore_mem>>
      %68 = tpu.memref_squeeze %67 : memref<1x!tpu.dma_semaphore, #tpu.memory_space<semaphore_mem>> -> memref<!tpu.dma_semaphore, #tpu.memory_space<semaphore_mem>>
      tpu.wait_dma2 semaphore(%68 : memref<!tpu.dma_semaphore, #tpu.memory_space<semaphore_mem>>) src(%65 : memref<1x128xf32, #tpu.memory_space<any>>) dst(%66 : memref<1x128xf32, #tpu.memory_space<vmem>>)
      %c8_i32 = arith.constant 8 : i32
      %69 = arith.addi %63, %c8_i32 : i32
      %c16_i32_45 = arith.constant 16 : i32
      %70 = arith.cmpi slt, %69, %c16_i32_45 : i32
      %71 = arith.extui %70 : i1 to i32
      %c0_i32_46 = arith.constant 0 : i32
      %72 = arith.cmpi ne, %71, %c0_i32_46 : i32
      scf.if %72 {
        %c8_i32_47 = arith.constant 8 : i32
        %73 = arith.addi %63, %c8_i32_47 : i32
        %74 = arith.addi %0, %73 : i32
        %75 = arith.index_cast %74 : i32 to index
        %76 = memref.load %arg1[%75] : memref<16xi32, #tpu.memory_space<smem>>
        %c0_i32_48 = arith.constant 0 : i32
        %77 = tpu.memref_slice %arg2[%76, %c0_i32_48] : memref<32x128xf32, #tpu.memory_space<any>> -> memref<1x128xf32, #tpu.memory_space<any>>
        %c0_i32_49 = arith.constant 0 : i32
        %78 = tpu.memref_slice %arg4[%73, %c0_i32_49] : memref<16x128xf32, #tpu.memory_space<vmem>> -> memref<1x128xf32, #tpu.memory_space<vmem>>
        %79 = tpu.memref_slice %arg5[%64] : memref<8x!tpu.dma_semaphore, #tpu.memory_space<semaphore_mem>> -> memref<1x!tpu.dma_semaphore, #tpu.memory_space<semaphore_mem>>
        %80 = tpu.memref_squeeze %79 : memref<1x!tpu.dma_semaphore, #tpu.memory_space<semaphore_mem>> -> memref<!tpu.dma_semaphore, #tpu.memory_space<semaphore_mem>>
        tpu.enqueue_dma source(%77 : memref<1x128xf32, #tpu.memory_space<any>>) target(%78 : memref<1x128xf32, #tpu.memory_space<vmem>>) target_semaphore(%80 : memref<!tpu.dma_semaphore, #tpu.memory_space<semaphore_mem>>)
      } else {
      }
    }
    %c16_i32_35 = arith.constant 16 : i32
    %c0 = arith.constant 0 : index
    %c0_36 = arith.constant 0 : index
    %58 = vector.load %arg4[%c0, %c0_36] : memref<16x128xf32, #tpu.memory_space<vmem>>, vector<16x128xf32>
    %cst = arith.constant 11.3137083 : f32
    %59 = vector.broadcast %cst : f32 to vector<16x128xf32>
    %60 = arith.mulf %58, %59 : vector<16x128xf32>
    %c0_37 = arith.constant 0 : index
    %c0_38 = arith.constant 0 : index
    %61 = vector.load %arg3[%c0_37, %c0_38] : memref<16x128xf32, #tpu.memory_space<vmem>>, vector<16x128xf32>
    tpu.vector_store %arg3[%c0_37, %c0_38], %60 {strides = array<i32>} : memref<16x128xf32, #tpu.memory_space<vmem>>, vector<16x128xf32>,
    return
  }
  func.func @transform_1(%arg0: i32, %arg1: memref<16xi32, #tpu.memory_space<smem>>) -> (i32, i32) {
    %c0_i32 = arith.constant 0 : i32
    %c0_i32_0 = arith.constant 0 : i32
    return %arg0, %c0_i32 : i32, i32
  }
}

</mosaic_0001>

<llo_original>
// kernel: tpu_custom_call.1
$region0: #{tpu_custom_call.1}
  #allocation0 [shape = 'u32[]', space=smem, size = 0x4, offset = 0x4, fixed_abs, tag = 'smem constant byte address 0x4 - core index']
  #allocation1 [shape = 'u32[72,128]{1,0:T(1,128)}', space=vmem, size = 0x9000, scoped, tag = 'internal scratch']
  #allocation2 [shape = 'f32[16,128]{1,0:T(8,128)}', space=vmem, size = 0x2000, scoped, tag = 'scratch operand']
  #allocation3 [shape = 's32[8]{0}', space=sflag, size = 0x20, scoped, tag = 'scratch operand']
  #allocation4 [shape = 's32[1]{0}', space=sflag, size = 0x4, scoped, tag = 'scoped memory for tpu_custom_call.1']
  #allocation5 [shape = 'u8[512]{0}', space=smem, size = 0x200, scoped, tag = 'prefetched SMEM operand 0']
  #allocation8 [shape = 's32[]', space=sflag, size = 0x4, offset = 0, fixed_abs, tag = 'sflag constant byte address 0x0 - dummy sync flag']
  #allocation9 [shape = 's32[]', space=sflag, size = 0x4, offset = 0, fixed_abs, tag = 'sflag constant byte address 0x0 - dummy sync flag']
  #allocation10 [shape = 'u32[]', space=smem, size = 0x4, offset = 0x44, fixed_abs, tag = 'smem constant byte address 0x44 - assertion arg 0']
  #allocation11 [shape = 'u32[]', space=smem, size = 0x4, offset = 0x48, fixed_abs, tag = 'smem constant byte address 0x48 - assertion arg 1']
  #allocation12 [shape = 's32[]', space=sflag, size = 0x4, offset = 0, fixed_abs, tag = 'sflag constant byte address 0x0 - dummy sync flag']
  #allocation13 [shape = 's32[]', space=sflag, size = 0x4, offset = 0, fixed_abs, tag = 'sflag constant byte address 0x0 - dummy sync flag']
  #allocation14 [shape = 's32[]', space=sflag, size = 0x4, offset = 0, fixed_abs, tag = 'sflag constant byte address 0x0 - dummy sync flag']
  #allocation15 [shape = 's32[]', space=sflag, size = 0x4, offset = 0, fixed_abs, tag = 'sflag constant byte address 0x0 - dummy sync flag']
  #allocation16 [shape = 's32[]', space=sflag, size = 0x4, offset = 0, fixed_abs, tag = 'sflag constant byte address 0x0 - dummy sync flag']
  #allocation17 [shape = 's32[]', space=sflag, size = 0x4, offset = 0, fixed_abs, tag = 'sflag constant byte address 0x0 - dummy sync flag']
  #allocation18 [shape = 's32[]', space=sflag, size = 0x4, offset = 0, fixed_abs, tag = 'sflag constant byte address 0x0 - dummy sync flag']
  #allocation19 [shape = 's32[]', space=sflag, size = 0x4, offset = 0, fixed_abs, tag = 'sflag constant byte address 0x0 - dummy sync flag']
  #allocation20 [shape = 's32[]', space=sflag, size = 0x4, offset = 0, fixed_abs, tag = 'sflag constant byte address 0x0 - dummy sync flag']
  #allocation21 [shape = 's32[]', space=sflag, size = 0x4, offset = 0, fixed_abs, tag = 'sflag constant byte address 0x0 - dummy sync flag']
  #allocation22 [shape = 's32[]', space=sflag, size = 0x4, offset = 0, fixed_abs, tag = 'sflag constant byte address 0x0 - dummy sync flag']
  #allocation23 [shape = 's32[]', space=sflag, size = 0x4, offset = 0, fixed_abs, tag = 'sflag constant byte address 0x0 - dummy sync flag']
  #allocation24 [shape = 's32[]', space=sflag, size = 0x4, offset = 0, fixed_abs, tag = 'sflag constant byte address 0x0 - dummy sync flag']
  #allocation25 [shape = 's32[]', space=sflag, size = 0x4, offset = 0, fixed_abs, tag = 'sflag constant byte address 0x0 - dummy sync flag']
  #allocation26 [shape = 's32[]', space=sflag, size = 0x4, offset = 0, fixed_abs, tag = 'sflag constant byte address 0x0 - dummy sync flag']
  #allocation27 [shape = 's32[]', space=sflag, size = 0x4, offset = 0, fixed_abs, tag = 'sflag constant byte address 0x0 - dummy sync flag']
  %s0 = inlined_call_operand.hbm [shape: s32[16], index: 0, kind: input, shape index: {}]
  %s1 = inlined_call_operand.hbm [shape: f32[32,128], index: 1, kind: input, shape index: {}]
  %s2 = inlined_call_operand.hbm [shape: f32[16,128], index: 2, kind: output, shape index: {}]
  %s3 = sld [smem:[#allocation0]]
  $region57: #{tpu_custom_call.1} parent=0
    _
  %s5 = ssub.s32 1, %s3
  %s6 = scalar_select 0, %s5, %s3
  %s8 = sshll.u32 %s0, 4
  %s9 = int_to_ptr.hbm [resolvable:$true] %s8
  %11 = dma.hbm_to_smem %s9, 16, [#allocation5], [#allocation4]
  %13 = dma.done [#allocation4], 16
  %14 = sfence
  $region1: #{tpu_custom_call.1} parent=0
    #allocation6 [shape = 'u8[8192]{0}', space=vmem, size = 0x2000, scoped, tag = 'output window, operand 0, single buffered']
    #allocation7 [shape = 's32[1]{0}', space=sflag, size = 0x4, scoped, tag = 'scoped memory for tpu_custom_call.1']
    %15 = vsyncpa [#allocation7], 0
    %s16 = smul.u32 0, 16
    %s17 = sld [smem:[#allocation5 + %s16]]
    %s18 = scalar_lea.hbm %s1, %s17
    // Predicated region
    $region2: #{tpu_custom_call.1} parent=1 // pred_check
      _
    $region3: #{tpu_custom_call.1} parent=1 // pred_check_branch
      %20 = sbr.rel target = $region5
    $region4: #{tpu_custom_call.1} parent=1 // pred_region
      %21 = sst [smem:[#allocation10]] [#allocation9]
      %22 = sst [smem:[#allocation11]] [#allocation8]
    $region5: #{tpu_custom_call.1} parent=1 // pred_fallthru
      _
    %24 = shalt.err (0)
    %s26 = sshll.u32 %s18, 4
    %s27 = int_to_ptr.hbm [resolvable:$true] %s26
    %s28 = sshll.u32 [#allocation2], 4
    %s29 = int_to_ptr.vmem [resolvable:$true] %s28
    %31 = dma.hbm_to_vmem [thread:$0]  %s27, 16, %s29, [#allocation3]
    %s32 = sadd.s32 %s16, 1
    %s33 = sld [smem:[#allocation5 + %s32]]
    %s34 = scalar_lea.hbm %s1, %s33
    %s35 = scalar_lea.vmem [#allocation2], 1
    %s36 = scalar_lea.sflag [#allocation3], 1
    // Predicated region
    $region6: #{tpu_custom_call.1} parent=1 // pred_check
      _
    $region7: #{tpu_custom_call.1} parent=1 // pred_check_branch
      %38 = sbr.rel target = $region9
    $region8: #{tpu_custom_call.1} parent=1 // pred_region
      %39 = sst [smem:[#allocation10]] [#allocation13]
      %40 = sst [smem:[#allocation11]] [#allocation12]
    $region9: #{tpu_custom_call.1} parent=1 // pred_fallthru
      _
    %42 = shalt.err (0)
    %s44 = sshll.u32 %s34, 4
    %s45 = int_to_ptr.hbm [resolvable:$true] %s44
    %s46 = sshll.u32 %s35, 4
    %s47 = int_to_ptr.vmem [resolvable:$true] %s46
    %49 = dma.hbm_to_vmem [thread:$0]  %s45, 16, %s47, %s36
    %s50 = sadd.s32 %s16, 2
    %s51 = sld [smem:[#allocation5 + %s50]]
    %s52 = scalar_lea.hbm %s1, %s51
    %s53 = scalar_lea.vmem [#allocation2], 2
    %s54 = scalar_lea.sflag [#allocation3], 2
    // Predicated region
    $region10: #{tpu_custom_call.1} parent=1 // pred_check
      _
    $region11: #{tpu_custom_call.1} parent=1 // pred_check_branch
      %56 = sbr.rel target = $region13
    $region12: #{tpu_custom_call.1} parent=1 // pred_region
      %57 = sst [smem:[#allocation10]] [#allocation15]
      %58 = sst [smem:[#allocation11]] [#allocation14]
    $region13: #{tpu_custom_call.1} parent=1 // pred_fallthru
      _
    %60 = shalt.err (0)
    %s62 = sshll.u32 %s52, 4
    %s63 = int_to_ptr.hbm [resolvable:$true] %s62
    %s64 = sshll.u32 %s53, 4
    %s65 = int_to_ptr.vmem [resolvable:$true] %s64
    %67 = dma.hbm_to_vmem [thread:$0]  %s63, 16, %s65, %s54
    %s68 = sadd.s32 %s16, 3
    %s69 = sld [smem:[#allocation5 + %s68]]
    %s70 = scalar_lea.hbm %s1, %s69
    %s71 = scalar_lea.vmem [#allocation2], 3
    %s72 = scalar_lea.sflag [#allocation3], 3
    // Predicated region
    $region14: #{tpu_custom_call.1} parent=1 // pred_check
      _
    $region15: #{tpu_custom_call.1} parent=1 // pred_check_branch
      %74 = sbr.rel target = $region17
    $region16: #{tpu_custom_call.1} parent=1 // pred_region
      %75 = sst [smem:[#allocation10]] [#allocation17]
      %76 = sst [smem:[#allocation11]] [#allocation16]
    $region17: #{tpu_custom_call.1} parent=1 // pred_fallthru
      _
    %78 = shalt.err (0)
    %s80 = sshll.u32 %s70, 4
    %s81 = int_to_ptr.hbm [resolvable:$true] %s80
    %s82 = sshll.u32 %s71, 4
    %s83 = int_to_ptr.vmem [resolvable:$true] %s82
    %85 = dma.hbm_to_vmem [thread:$0]  %s81, 16, %s83, %s72
    %s86 = sadd.s32 %s16, 4
    %s87 = sld [smem:[#allocation5 + %s86]]
    %s88 = scalar_lea.hbm %s1, %s87
    %s89 = scalar_lea.vmem [#allocation2], 4
    %s90 = scalar_lea.sflag [#allocation3], 4
    // Predicated region
    $region18: #{tpu_custom_call.1} parent=1 // pred_check
      _
    $region19: #{tpu_custom_call.1} parent=1 // pred_check_branch
      %92 = sbr.rel target = $region21
    $region20: #{tpu_custom_call.1} parent=1 // pred_region
      %93 = sst [smem:[#allocation10]] [#allocation19]
      %94 = sst [smem:[#allocation11]] [#allocation18]
    $region21: #{tpu_custom_call.1} parent=1 // pred_fallthru
      _
    %96 = shalt.err (0)
    %s98 = sshll.u32 %s88, 4
    %s99 = int_to_ptr.hbm [resolvable:$true] %s98
    %s100 = sshll.u32 %s89, 4
    %s101 = int_to_ptr.vmem [resolvable:$true] %s100
    %103 = dma.hbm_to_vmem [thread:$0]  %s99, 16, %s101, %s90
    %s104 = sadd.s32 %s16, 5
    %s105 = sld [smem:[#allocation5 + %s104]]
    %s106 = scalar_lea.hbm %s1, %s105
    %s107 = scalar_lea.vmem [#allocation2], 5
    %s108 = scalar_lea.sflag [#allocation3], 5
    // Predicated region
    $region22: #{tpu_custom_call.1} parent=1 // pred_check
      _
    $region23: #{tpu_custom_call.1} parent=1 // pred_check_branch
      %110 = sbr.rel target = $region25
    $region24: #{tpu_custom_call.1} parent=1 // pred_region
      %111 = sst [smem:[#allocation10]] [#allocation21]
      %112 = sst [smem:[#allocation11]] [#allocation20]
    $region25: #{tpu_custom_call.1} parent=1 // pred_fallthru
      _
    %114 = shalt.err (0)
    %s116 = sshll.u32 %s106, 4
    %s117 = int_to_ptr.hbm [resolvable:$true] %s116
    %s118 = sshll.u32 %s107, 4
    %s119 = int_to_ptr.vmem [resolvable:$true] %s118
    %121 = dma.hbm_to_vmem [thread:$0]  %s117, 16, %s119, %s108
    %s122 = sadd.s32 %s16, 6
    %s123 = sld [smem:[#allocation5 + %s122]]
    %s124 = scalar_lea.hbm %s1, %s123
    %s125 = scalar_lea.vmem [#allocation2], 6
    %s126 = scalar_lea.sflag [#allocation3], 6
    // Predicated region
    $region26: #{tpu_custom_call.1} parent=1 // pred_check
      _
    $region27: #{tpu_custom_call.1} parent=1 // pred_check_branch
      %128 = sbr.rel target = $region29
    $region28: #{tpu_custom_call.1} parent=1 // pred_region
      %129 = sst [smem:[#allocation10]] [#allocation23]
      %130 = sst [smem:[#allocation11]] [#allocation22]
    $region29: #{tpu_custom_call.1} parent=1 // pred_fallthru
      _
    %132 = shalt.err (0)
    %s134 = sshll.u32 %s124, 4
    %s135 = int_to_ptr.hbm [resolvable:$true] %s134
    %s136 = sshll.u32 %s125, 4
    %s137 = int_to_ptr.vmem [resolvable:$true] %s136
    %139 = dma.hbm_to_vmem [thread:$0]  %s135, 16, %s137, %s126
    %s140 = sadd.s32 %s16, 7
    %s141 = sld [smem:[#allocation5 + %s140]]
    %s142 = scalar_lea.hbm %s1, %s141
    %s143 = scalar_lea.vmem [#allocation2], 7
    %s144 = scalar_lea.sflag [#allocation3], 7
    // Predicated region
    $region30: #{tpu_custom_call.1} parent=1 // pred_check
      _
    $region31: #{tpu_custom_call.1} parent=1 // pred_check_branch
      %146 = sbr.rel target = $region33
    $region32: #{tpu_custom_call.1} parent=1 // pred_region
      %147 = sst [smem:[#allocation10]] [#allocation25]
      %148 = sst [smem:[#allocation11]] [#allocation24]
    $region33: #{tpu_custom_call.1} parent=1 // pred_fallthru
      _
    %150 = shalt.err (0)
    %s152 = sshll.u32 %s142, 4
    %s153 = int_to_ptr.hbm [resolvable:$true] %s152
    %s154 = sshll.u32 %s143, 4
    %s155 = int_to_ptr.vmem [resolvable:$true] %s154
    %157 = dma.hbm_to_vmem [thread:$0]  %s153, 16, %s155, %s144
    loop: start=0, step=1, limit=16
    $region34: #{tpu_custom_call.1} parent=1 // loop_pre_header
      _
    $region35: #{tpu_custom_call.1} parent=1 // loop_header
      %s159 = sphi 0, %s163
      %p160 = scmp.ge.s32.totalorder %s159, 16
    $region36: #{tpu_custom_call.1} parent=1 // loop_header_branch
      %162 = sbr.rel (%p160) target = $region40
    $region37: #{tpu_custom_call.1} parent=1 // loop_body
      %s164 = sand.u32 %s159, 7
      %s165 = scalar_lea.sflag [#allocation3], %s164
      %s166 = smul.u32 1, 1
      %s167 = sshll.u32 %s166, 4
      %168 = dma.done %s165, %s167
      %s169 = sadd.s32 %s159, 8
      %p170 = scmp.lt.s32.totalorder %s169, 16
      // Predicated region
      $region41: #{tpu_custom_call.1} parent=37 // pred_check
        %p171 = pneg %p170
      $region42: #{tpu_custom_call.1} parent=37 // pred_check_branch
        %173 = sbr.rel (%p171) target = $region44
      $region43: #{tpu_custom_call.1} parent=37 // pred_region
        %s174 = sadd.s32 %s16, %s169
        %s175 = sld [smem:[#allocation5 + %s174]]
        %s176 = scalar_lea.hbm %s1, %s175
        %s177 = scalar_lea.vmem [#allocation2], %s169
        // Predicated region
        $region45: #{tpu_custom_call.1} parent=43 // pred_check
          _
        $region46: #{tpu_custom_call.1} parent=43 // pred_check_branch
          %179 = sbr.rel target = $region48
        $region47: #{tpu_custom_call.1} parent=43 // pred_region
          %180 = sst [smem:[#allocation10]] [#allocation27]
          %181 = sst [smem:[#allocation11]] [#allocation26]
        $region48: #{tpu_custom_call.1} parent=43 // pred_fallthru
          _
        %183 = shalt.err (0)
        %s185 = sshll.u32 %s176, 4
        %s186 = int_to_ptr.hbm [resolvable:$true] %s185
        %s187 = sshll.u32 %s177, 4
        %s188 = int_to_ptr.vmem [resolvable:$true] %s187
        %190 = dma.hbm_to_vmem [thread:$0]  %s186, 16, %s188, %s165
      $region44: #{tpu_custom_call.1} parent=37 // pred_fallthru
        _
    $region38: #{tpu_custom_call.1} parent=1 // loop_footer
      %s163 = sadd.s32 1, %s159
    $region39: #{tpu_custom_call.1} parent=1 // loop_footer_branch
      %158 = sbr.rel target = $region35
    $region40: #{tpu_custom_call.1} parent=1 // loop_exit
      _
    %v191 = vld [vmem:[#allocation2] sm:$0xff]
    %v192 = vld [vmem:[#allocation2 + $0x8] sm:$0xff]
    %v193 = vmul.f32 %v191, 11.313708
    %v194 = vmul.f32 %v192, 11.313708
    %195 = vst [vmem:[#allocation6] sm:$0xff] %v193
    %196 = vst [vmem:[#allocation6 + $0x8] sm:$0xff] %v194
    // Predicated region
    $region49: #{tpu_custom_call.1} parent=1 // pred_check
      _
    $region50: #{tpu_custom_call.1} parent=1 // pred_check_branch
      %198 = sbr.rel (0) target = $region52
    $region51: #{tpu_custom_call.1} parent=1 // pred_region
      %200 = vsyncadd [#allocation7], 0
      %s201 = sshll.u32 [#allocation6], 4
      %s202 = int_to_ptr.vmem [resolvable:$true] %s201
      %s203 = sshll.u32 %s2, 4
      %s204 = int_to_ptr.hbm [resolvable:$true] %s203
      %209 = dma.vmem_to_hbm [thread:$0]  %s202, 256, %s204, [#allocation7], 128, 128, 8
    $region52: #{tpu_custom_call.1} parent=1 // pred_fallthru
      _
    // Predicated region
    $region53: #{tpu_custom_call.1} parent=1 // pred_check
      _
    $region54: #{tpu_custom_call.1} parent=1 // pred_check_branch
      %211 = sbr.rel (0) target = $region56
    $region55: #{tpu_custom_call.1} parent=1 // pred_region
      %213 = dma.done [#allocation7], 256
    $region56: #{tpu_custom_call.1} parent=1 // pred_fallthru
      _
    %214 = vsyncpa [#allocation7], 1
  %215 = vsyncmov [#allocation3]
  %s216 = vpop.sfrf %215
  %p217 = scmp.eq.s32.totalorder %s216, 0
  %p218 = pneg %p217
  %220 = shalt.err (%p218)
  %s221 = scalar_lea.sflag [#allocation3], 1
  %222 = vsyncmov %s221
  %s223 = vpop.sfrf %222
  %p224 = scmp.eq.s32.totalorder %s223, 0
  %p225 = pneg %p224
  %227 = shalt.err (%p225)
  %s228 = scalar_lea.sflag [#allocation3], 2
  %229 = vsyncmov %s228
  %s230 = vpop.sfrf %229
  %p231 = scmp.eq.s32.totalorder %s230, 0
  %p232 = pneg %p231
  %234 = shalt.err (%p232)
  %s235 = scalar_lea.sflag [#allocation3], 3
  %236 = vsyncmov %s235
  %s237 = vpop.sfrf %236
  %p238 = scmp.eq.s32.totalorder %s237, 0
  %p239 = pneg %p238
  %241 = shalt.err (%p239)
  %s242 = scalar_lea.sflag [#allocation3], 4
  %243 = vsyncmov %s242
  %s244 = vpop.sfrf %243
  %p245 = scmp.eq.s32.totalorder %s244, 0
  %p246 = pneg %p245
  %248 = shalt.err (%p246)
  %s249 = scalar_lea.sflag [#allocation3], 5
  %250 = vsyncmov %s249
  %s251 = vpop.sfrf %250
  %p252 = scmp.eq.s32.totalorder %s251, 0
  %p253 = pneg %p252
  %255 = shalt.err (%p253)
  %s256 = scalar_lea.sflag [#allocation3], 6
  %257 = vsyncmov %s256
  %s258 = vpop.sfrf %257
  %p259 = scmp.eq.s32.totalorder %s258, 0
  %p260 = pneg %p259
  %262 = shalt.err (%p260)
  %s263 = scalar_lea.sflag [#allocation3], 7
  %264 = vsyncmov %s263
  %s265 = vpop.sfrf %264
  %p266 = scmp.eq.s32.totalorder %s265, 0
  %p267 = pneg %p266
  %269 = shalt.err (%p267)

</llo_original>
